<compile_context>
chip_gen: v5e
topology: v5e:2x2
jax: 0.10.0
libtpu: 0.0.40
codegen_flags: <defaults>
</compile_context>

<pallas_src>
import math

import jax
import jax.numpy as jnp
from jax.experimental import pallas as pl
from jax.experimental.pallas import tpu as pltpu


def _round_up(n: int, m: int) -> int:
    return ((n + m - 1) // m) * m


def _linear_kernel(x_ref, w_ref, o_ref):
    """One row tile of the (bias-free) linear projection: (tm, K) @ (K, N)."""
    o_ref[...] = jnp.dot(
        x_ref[...], w_ref[...], preferred_element_type=jnp.float32
    ).astype(o_ref.dtype)


def time_feature_embedding(x: jax.Array, weight: jax.Array) -> jax.Array:
    """JAX/Pallas equivalent of TimeFeatureEmbedding.forward(x).

    Args:
      x:      (batch, seq, d_inp) time features.
      weight: (d_model, d_inp) -- the nn.Linear weight (bias-free).

    Returns:
      (batch, seq, d_model) embeddings, same dtype as x.
    """
    B, S, d_inp = x.shape
    d_model, d_inp_w = weight.shape
    assert d_inp == d_inp_w, "weight / input feature-dim mismatch"

    # Weight is cast to the activation dtype (precision choice: if x is bf16
    # this downcasts the fp32 torch weight; MXU accumulates in f32 regardless).
    w = weight.T.astype(x.dtype)  # (d_inp, d_model)

    M = B * S

    # ---- Row folding for lane-dense output when d_model < 128 --------------
    # Fold r consecutive rows into one kernel row so the output last dim
    # becomes r*d_model (ideally 128). Both the x reshape and the output
    # reshape are pure contiguous reshapes; the weight becomes block-diagonal.
    if d_model < 128:
        r = math.gcd(max(1, 128 // d_model), M)
    else:
        r = 1

    K = r * d_inp
    N = r * d_model
    Mr = M // r

    x2 = x.reshape(Mr, K)  # pure view of contiguous data
    if r > 1:
        w = jnp.kron(jnp.eye(r, dtype=w.dtype), w)  # (K, N) block-diagonal

    # ---- Adaptive row tile ---------------------------------------------------
    # Keep double-buffered input+output blocks under ~16 MiB; with
    # vmem_limit_bytes = 32 MiB this is safe on v5e (128 MiB phys), v6e
    # (128 MiB) and v7x (64 MiB) alike, while giving ~2k-row tiles at
    # d_model=1024 (>=90% of the HBM-write roofline on v6e/v7x).
    x_bytes = jnp.dtype(x.dtype).itemsize
    out_dtype = x.dtype
    out_bytes = jnp.dtype(out_dtype).itemsize
    budget = 16 * 1024 * 1024
    per_row = 2 * (N * out_bytes + K * x_bytes)  # double-buffered out + in
    tm = max(8, min(budget // per_row, 4096))
    tm = (tm // 8) * 8

    if tm >= Mr:
        # Whole problem fits in one tile.
        tm = Mr  # full-extent block (satisfies the (8,128) rule by equality)
        if Mr >= 16:
            # v7x has 2 TensorCores: split into >=2 parallel tiles so both
            # cores get work (HBM is shared, so this mostly hides overhead).
            split = _round_up(pl.cdiv(Mr, 2), 8)
            if split < Mr:
                tm = split

    grid = (pl.cdiv(Mr, tm),)

    cost = pl.CostEstimate(
        flops=2 * Mr * K * N,
        transcendentals=0,
        bytes_accessed=Mr * K * x_bytes + K * N * x_bytes + Mr * N * out_bytes,
    )

    out = pl.pallas_call(
        _linear_kernel,
        out_shape=jax.ShapeDtypeStruct((Mr, N), out_dtype),
        grid_spec=pl.GridSpec(
            grid=grid,
            in_specs=[
                # Activations: one row tile per grid step; K is the full
                # (tiny) array dim so the (8,128) rule holds by equality.
                pl.BlockSpec((tm, K), lambda i: (i, 0)),
                # Weight: full (K, N) block, resident across all grid steps.
                pl.BlockSpec((K, N), lambda i: (0, 0)),
            ],
            out_specs=pl.BlockSpec((tm, N), lambda i: (i, 0)),
        ),
        compiler_params=pltpu.CompilerParams(
            dimension_semantics=("parallel",),  # row tiles are independent
            vmem_limit_bytes=32 * 1024 * 1024,
        ),
        cost_estimate=cost,
    )(x2, w)

    # Pure contiguous reshape back to (B, S, d_model): no slice, no copy.
    return out.reshape(B, S, d_model)


def _reference(x: jax.Array, weight: jax.Array) -> jax.Array:
    """Plain-JAX reference: y = x @ W.T (nn.Linear, bias=False)."""
    return jnp.einsum("bsd,md->bsm", x, weight)


if __name__ == "__main__":
    key = jax.random.PRNGKey(0)

    # Case 1: freq='h' -> d_inp = 4; small d_model (< 128) exercises the
    # row-folding (lane-dense output) path.
    d_inp, d_model = 4, 32
    batch, seq = 2, 8
    kx, kw, key = jax.random.split(key, 3)
    x = jax.random.normal(kx, (batch, seq, d_inp), dtype=jnp.float32)
    weight = jax.random.normal(kw, (d_model, d_inp), dtype=jnp.float32) * (
        1.0 / math.sqrt(d_inp)
    )
    out = jax.block_until_ready(time_feature_embedding(x, weight))
    ref = _reference(x, weight)
    assert out.shape == (batch, seq, d_model), out.shape
    assert out.dtype == jnp.float32
    assert jnp.allclose(out, ref, atol=1e-4, rtol=1e-4), "case-1 mismatch"

    # Case 2: freq='t' -> d_inp = 5; d_model >= 128 (no folding) with a row
    # count that does not divide the tile, exercising partial-block masking.
    d_inp2, d_model2 = 5, 256
    batch2, seq2 = 3, 7
    kx2, kw2, key = jax.random.split(key, 3)
    x2 = jax.random.normal(kx2, (batch2, seq2, d_inp2), dtype=jnp.float32)
    weight2 = jax.random.normal(kw2, (d_model2, d_inp2), dtype=jnp.float32) * (
        1.0 / math.sqrt(d_inp2)
    )
    out2 = jax.block_until_ready(time_feature_embedding(x2, weight2))
    ref2 = _reference(x2, weight2)
    assert out2.shape == (batch2, seq2, d_model2), out2.shape
    assert jnp.allclose(out2, ref2, atol=1e-4, rtol=1e-4), "case-2 mismatch"

    print("KERNEL_OK")
</pallas_src>

<mosaic_0001>
module attributes {stable_mosaic.version = 11 : i64} {
  func.func @_linear_kernel(%arg0: i32, %arg1: memref<4x16xf32, #tpu.memory_space<vmem>>, %arg2: memref<16x128xf32, #tpu.memory_space<vmem>>, %arg3: memref<4x128xf32, #tpu.memory_space<vmem>>) attributes {dimension_semantics = [#tpu.dimension_semantics<parallel>], iteration_bounds = array<i64: 1>, scalar_prefetch = 0 : i64, scratch_operands = 0 : i64, tpu.core_type = #tpu.core_type<tc>, window_params = [{transform_indices = @transform_0, window_bounds = array<i64: 4, 16>}, {pipeline_mode = #tpu.pipeline_mode<synchronous>, transform_indices = @transform_1, window_bounds = array<i64: 16, 128>}, {transform_indices = @transform_2, window_bounds = array<i64: 4, 128>}]} {
    %c0 = arith.constant 0 : index
    %c0_0 = arith.constant 0 : index
    %0 = vector.load %arg1[%c0, %c0_0] : memref<4x16xf32, #tpu.memory_space<vmem>>, vector<4x16xf32>
    %c0_1 = arith.constant 0 : index
    %c0_2 = arith.constant 0 : index
    %1 = vector.load %arg2[%c0_1, %c0_2] : memref<16x128xf32, #tpu.memory_space<vmem>>, vector<16x128xf32>
    %cst = arith.constant dense<0.000000e+00> : vector<4x128xf32>
    %2 = tpu.matmul %0, %1, %cst {dimension_numbers = #tpu.dot_dimension_numbers<[1], [0], [0], [1], [0, 0, 1, 1], [], []>} : vector<4x16xf32>, vector<16x128xf32>, vector<4x128xf32> -> vector<4x128xf32>
    %c0_3 = arith.constant 0 : index
    %c0_4 = arith.constant 0 : index
    %3 = vector.load %arg3[%c0_3, %c0_4] : memref<4x128xf32, #tpu.memory_space<vmem>>, vector<4x128xf32>
    tpu.vector_store %arg3[%c0_3, %c0_4], %2 {strides = array<i32>} : memref<4x128xf32, #tpu.memory_space<vmem>>, vector<4x128xf32>,
    return
  }
  func.func @transform_0(%arg0: i32) -> (i32, i32) {
    %c0_i32 = arith.constant 0 : i32
    %c0_i32_0 = arith.constant 0 : i32
    return %arg0, %c0_i32 : i32, i32
  }
  func.func @transform_1(%arg0: i32) -> (i32, i32) {
    %c0_i32 = arith.constant 0 : i32
    %c0_i32_0 = arith.constant 0 : i32
    %c0_i32_1 = arith.constant 0 : i32
    return %c0_i32, %c0_i32_0 : i32, i32
  }
  func.func @transform_2(%arg0: i32) -> (i32, i32) {
    %c0_i32 = arith.constant 0 : i32
    %c0_i32_0 = arith.constant 0 : i32
    return %arg0, %c0_i32 : i32, i32
  }
}

</mosaic_0001>

<llo_original>
// kernel: tpu_custom_call.1
$region0: #{tpu_custom_call.1}
  #allocation0 [shape = 'u32[]', space=smem, size = 0x4, offset = 0x4, fixed_abs, tag = 'smem constant byte address 0x4 - core index']
  #allocation1 [shape = 'u32[72,128]{1,0:T(1,128)}', space=vmem, size = 0x9000, scoped, tag = 'internal scratch']
  %s0 = inlined_call_operand.hbm [shape: f32[4,16], index: 0, kind: input, shape index: {}]
  %s1 = inlined_call_operand.hbm [shape: f32[16,128], index: 1, kind: input, shape index: {}]
  %s2 = inlined_call_operand.hbm [shape: f32[4,128], index: 2, kind: output, shape index: {}]
  %s3 = sld [smem:[#allocation0]]
  $region26: #{tpu_custom_call.1} parent=0
    _
  %s5 = ssub.s32 1, %s3
  %s6 = scalar_select 0, %s5, %s3
  $region1: #{tpu_custom_call.1} parent=0
    #allocation2 [shape = 'u8[2048]{0}', space=vmem, size = 0x800, scoped, tag = 'input window, operand 0, single buffered']
    #allocation3 [shape = 's32[1]{0}', space=sflag, size = 0x4, scoped, tag = 'scoped memory for tpu_custom_call.1']
    #allocation4 [shape = 's32[1]{0}', space=sflag, size = 0x4, scoped, tag = 'scoped memory for tpu_custom_call.1']
    #allocation5 [shape = 'u8[8192]{0}', space=vmem, size = 0x2000, scoped, tag = 'input window, operand 1, single buffered']
    #allocation6 [shape = 's32[1]{0}', space=sflag, size = 0x4, scoped, tag = 'scoped memory for tpu_custom_call.1']
    #allocation7 [shape = 'u8[2048]{0}', space=vmem, size = 0x800, scoped, tag = 'output window, operand 0, single buffered']
    %7 = vsyncpa [#allocation3], 0
    %8 = vsyncpa [#allocation6], 0
    %9 = vsyncpa [#allocation4], 0
    // Predicated region
    $region2: #{tpu_custom_call.1} parent=1 // pred_check
      _
    $region3: #{tpu_custom_call.1} parent=1 // pred_check_branch
      %11 = sbr.rel (0) target = $region5
    $region4: #{tpu_custom_call.1} parent=1 // pred_region
      %13 = vsyncadd [#allocation3], 0
      %s15 = sshll.u32 %s0, 4
      %s16 = int_to_ptr.hbm [resolvable:$true] %s15
      %s17 = sshll.u32 [#allocation2], 4
      %s18 = int_to_ptr.vmem [resolvable:$true] %s17
      %20 = dma.hbm_to_vmem [thread:$0]  %s16, 64, %s18, [#allocation3]
    $region5: #{tpu_custom_call.1} parent=1 // pred_fallthru
      _
    // Predicated region
    $region6: #{tpu_custom_call.1} parent=1 // pred_check
      _
    $region7: #{tpu_custom_call.1} parent=1 // pred_check_branch
      %22 = sbr.rel (0) target = $region9
    $region8: #{tpu_custom_call.1} parent=1 // pred_region
      %24 = vsyncadd [#allocation6], 0
      %s25 = sshll.u32 %s1, 4
      %s26 = int_to_ptr.hbm [resolvable:$true] %s25
      %s27 = sshll.u32 [#allocation5], 4
      %s28 = int_to_ptr.vmem [resolvable:$true] %s27
      %33 = dma.hbm_to_vmem [thread:$0]  %s26, 256, %s28, [#allocation6], 128, 128, 8
    $region9: #{tpu_custom_call.1} parent=1 // pred_fallthru
      _
    // Predicated region
    $region10: #{tpu_custom_call.1} parent=1 // pred_check
      _
    $region11: #{tpu_custom_call.1} parent=1 // pred_check_branch
      %35 = sbr.rel (0) target = $region13
    $region12: #{tpu_custom_call.1} parent=1 // pred_region
      %37 = dma.done [#allocation3], 64
    $region13: #{tpu_custom_call.1} parent=1 // pred_fallthru
      _
    // Predicated region
    $region14: #{tpu_custom_call.1} parent=1 // pred_check
      _
    $region15: #{tpu_custom_call.1} parent=1 // pred_check_branch
      %39 = sbr.rel (0) target = $region17
    $region16: #{tpu_custom_call.1} parent=1 // pred_region
      %41 = dma.done [#allocation6], 256
    $region17: #{tpu_custom_call.1} parent=1 // pred_fallthru
      _
    %v42 = vld [vmem:[#allocation2] sm:$0xf]
    %v43 = vld [vmem:[#allocation5] sm:$0xff]
    %v44 = vld [vmem:[#allocation5 + $0x8] sm:$0xff]
    %vm45 = vcmask 130048
    %v47 = vsel %vm45, %v42, 0
    %49 = vmatpush.msra.mxu0 0.0
    %50 = vmatpush.msra.mxu0 0.0
    %51 = vmatpush.msra.mxu0 0.0
    %52 = vmatpush.msra.mxu0 0.0
    %53 = vmatpush.msra.mxu0 0.0
    %54 = vmatpush.msra.mxu0 0.0
    %55 = vmatpush.msra.mxu0 0.0
    %56 = vmatpush.msra.mxu0 0.0
    %57 = vmatpush.msra.mxu0 0.0
    %58 = vmatpush.msra.mxu0 0.0
    %59 = vmatpush.msra.mxu0 0.0
    %60 = vmatpush.msra.mxu0 0.0
    %61 = vmatpush.msra.mxu0 0.0
    %62 = vmatpush.msra.mxu0 0.0
    %63 = vmatpush.msra.mxu0 %v44
    %64 = vmatpush.msra.mxu0 %v43
    %65 = vmatmul.f32.gmra.mxu0 %v47
    %v66 = vpop.f32.mrf.mxu0
    %v67 = vadd.f32 0.0, %v66
    %68 = vdwg.mxu0
    %69 = vst [vmem:[#allocation7] sm:$0xf] %v67
    // Predicated region
    $region18: #{tpu_custom_call.1} parent=1 // pred_check
      _
    $region19: #{tpu_custom_call.1} parent=1 // pred_check_branch
      %71 = sbr.rel (0) target = $region21
    $region20: #{tpu_custom_call.1} parent=1 // pred_region
      %73 = vsyncadd [#allocation4], 0
      %s75 = sshll.u32 [#allocation7], 4
      %s76 = int_to_ptr.vmem [resolvable:$true] %s75
      %s77 = sshll.u32 %s2, 4
      %s78 = int_to_ptr.hbm [resolvable:$true] %s77
      %80 = dma.vmem_to_hbm [thread:$0]  %s76, 64, %s78, [#allocation4]
    $region21: #{tpu_custom_call.1} parent=1 // pred_fallthru
      _
    // Predicated region
    $region22: #{tpu_custom_call.1} parent=1 // pred_check
      _
    $region23: #{tpu_custom_call.1} parent=1 // pred_check_branch
      %82 = sbr.rel (0) target = $region25
    $region24: #{tpu_custom_call.1} parent=1 // pred_region
      %84 = dma.done [#allocation4], 64
    $region25: #{tpu_custom_call.1} parent=1 // pred_fallthru
      _
    %85 = vsyncpa [#allocation3], 1
    %86 = vsyncpa [#allocation6], 1
    %87 = vsyncpa [#allocation4], 1

</llo_original>
